<compile_context>
chip_gen: v7x
topology: tpu7x:2x2x1
jax: 0.10.0
libtpu: 0.0.40
codegen_flags: <defaults>
</compile_context>

<pallas_src>
import functools

import jax
import jax.numpy as jnp
from jax import lax
from jax.experimental import pallas as pl
from jax.experimental.pallas import tpu as pltpu

LANES = 128


def _noise_kernel(seed_ref, x_ref, o_ref, *, block_rows: int,
                  exp_bits: int, offset: float):
    i_u = pl.program_id(0).astype(jnp.uint32)
    rows, lanes = x_ref.shape

    # Global element index of every element in this tile.
    row = lax.broadcasted_iota(jnp.int32, (rows, lanes), 0).astype(jnp.uint32)
    lane = lax.broadcasted_iota(jnp.int32, (rows, lanes), 1).astype(jnp.uint32)
    idx = (i_u * jnp.uint32(block_rows) + row) * jnp.uint32(lanes) + lane

    # Mix seed and index (murmur3 finalizer) -> uniform 32-bit hash.
    seed = seed_ref[0].astype(jnp.uint32) * jnp.uint32(0x9E3779B9)
    h = idx ^ seed
    h = (h ^ (h >> 16)) * jnp.uint32(0x85EBCA6B)
    h = (h ^ (h >> 13)) * jnp.uint32(0xC2B2AE35)
    h = h ^ (h >> 16)

    # Exponent trick: mantissa from top hash bits, exponent = 127 - quants
    # -> value in [2^-q, 2^(1-q)); subtract 1.5*2^-q -> [-0.5, 0.5) * 2^-q.
    fbits = (h >> 9) | jnp.uint32(exp_bits)
    noise = lax.bitcast_convert_type(fbits, jnp.float32) - jnp.float32(offset)

    o_ref[...] = (x_ref[...].astype(jnp.float32) + noise).astype(o_ref.dtype)


def _round_up(x: int, m: int) -> int:
    return ((x + m - 1) // m) * m


def norm_noise_quantization(x: jax.Array, seed: int, quants: int = 2,
                            block_rows: int = 1024) -> jax.Array:
    """y = x + (uniform[0,1) - 0.5) / 2**quants, computed in a Pallas kernel."""
    assert 0 <= quants < 120, "quants must keep the noise exponent in f32 range"
    assert block_rows % 8 == 0

    orig_shape = x.shape
    n = x.size
    itemsize = jnp.dtype(x.dtype).itemsize

    # Flatten to a lane-dense 2D slab; pad rows so the (8, 128) tiling rule and
    # the grid division are always satisfied for arbitrary NCHW shapes.
    rows = _round_up(pl.cdiv(n, LANES), 8)
    br = min(block_rows, rows)          # both are multiples of 8
    rows = _round_up(rows, br)
    grid = rows // br

    x_flat = x.reshape(-1)
    pad = rows * LANES - n
    if pad:
        x_flat = jnp.pad(x_flat, (0, pad))
    x2 = x_flat.reshape(rows, LANES)

    exp_bits = (127 - quants) << 23
    offset = 1.5 * (2.0 ** (-quants))

    kernel = functools.partial(_noise_kernel, block_rows=br,
                               exp_bits=exp_bits, offset=offset)

    out = pl.pallas_call(
        kernel,
        out_shape=jax.ShapeDtypeStruct((rows, LANES), x.dtype),
        grid_spec=pltpu.PrefetchScalarGridSpec(
            num_scalar_prefetch=1,  # seed lives in SMEM
            grid=(grid,),
            in_specs=[pl.BlockSpec((br, LANES), lambda i, seed: (i, 0))],
            out_specs=pl.BlockSpec((br, LANES), lambda i, seed: (i, 0)),
        ),
        compiler_params=pltpu.CompilerParams(
            dimension_semantics=("parallel",),  # shard rows across TCs (v7x)
        ),
        cost_estimate=pl.CostEstimate(
            flops=10 * rows * LANES,
            transcendentals=0,
            bytes_accessed=2 * rows * LANES * itemsize,
        ),
    )(jnp.array([seed], dtype=jnp.int32), x2)

    out_flat = out.reshape(-1)
    if pad:
        out_flat = out_flat[:n]
    return out_flat.reshape(orig_shape)


if __name__ == "__main__":
    quants = 2
    key = jax.random.PRNGKey(0)
    x = jax.random.normal(key, (2, 4, 16, 16), dtype=jnp.float32)  # NCHW

    y = norm_noise_quantization(x, seed=1234, quants=quants)
    y = jax.block_until_ready(y)

    # Sanity checks: shape/dtype preserved, noise bounded by 0.5 / 2**quants.
    assert y.shape == x.shape and y.dtype == x.dtype
    max_dev = float(jnp.max(jnp.abs(y - x)))
    assert max_dev <= 0.5 / (2 ** quants) + 1e-6, max_dev
    # Noise should actually be non-trivial (not all zeros).
    assert max_dev > 1e-4, max_dev

    print("KERNEL_OK")
</pallas_src>

<mosaic_0001>
module attributes {stable_mosaic.version = 11 : i64} {
  func.func @_noise_kernel(%arg0: i32, %arg1: memref<1xi32, #tpu.memory_space<smem>>, %arg2: memref<16x128xf32, #tpu.memory_space<vmem>>, %arg3: memref<16x128xf32, #tpu.memory_space<vmem>>) attributes {dimension_semantics = [#tpu.dimension_semantics<parallel>], iteration_bounds = array<i64: 1>, scalar_prefetch = 1 : i64, scratch_operands = 0 : i64, tpu.core_type = #tpu.core_type<tc>, window_params = [{transform_indices = @transform_0, window_bounds = array<i64: 16, 128>}, {transform_indices = @transform_1, window_bounds = array<i64: 16, 128>}]} {
    %0 = tpu.iota {dimensions = array<i32: 0>} : vector<16x128xi32>
    %1 = tpu.iota {dimensions = array<i32: 1>} : vector<16x128xi32>
    %c16_i32 = arith.constant 16 : i32
    %2 = arith.muli %arg0, %c16_i32 : i32
    %3 = vector.broadcast %2 : i32 to vector<16x128xi32>
    %4 = arith.addi %3, %0 : vector<16x128xi32>
    %c128_i32 = arith.constant 128 : i32
    %5 = vector.broadcast %c128_i32 : i32 to vector<16x128xi32>
    %6 = arith.muli %4, %5 : vector<16x128xi32>
    %7 = arith.addi %6, %1 : vector<16x128xi32>
    %c0 = arith.constant 0 : index
    %8 = memref.load %arg1[%c0] : memref<1xi32, #tpu.memory_space<smem>>
    %c-1640531527_i32 = arith.constant -1640531527 : i32
    %9 = arith.muli %8, %c-1640531527_i32 : i32
    %10 = vector.broadcast %9 : i32 to vector<16x128xi32>
    %11 = arith.xori %7, %10 : vector<16x128xi32>
    %c16_i32_0 = arith.constant 16 : i32
    %12 = vector.broadcast %c16_i32_0 : i32 to vector<16x128xi32>
    %13 = arith.shrui %11, %12 : vector<16x128xi32>
    %14 = arith.xori %11, %13 : vector<16x128xi32>
    %c-2048144789_i32 = arith.constant -2048144789 : i32
    %15 = vector.broadcast %c-2048144789_i32 : i32 to vector<16x128xi32>
    %16 = arith.muli %14, %15 : vector<16x128xi32>
    %c13_i32 = arith.constant 13 : i32
    %17 = vector.broadcast %c13_i32 : i32 to vector<16x128xi32>
    %18 = arith.shrui %16, %17 : vector<16x128xi32>
    %19 = arith.xori %16, %18 : vector<16x128xi32>
    %c-1028477387_i32 = arith.constant -1028477387 : i32
    %20 = vector.broadcast %c-1028477387_i32 : i32 to vector<16x128xi32>
    %21 = arith.muli %19, %20 : vector<16x128xi32>
    %c16_i32_1 = arith.constant 16 : i32
    %22 = vector.broadcast %c16_i32_1 : i32 to vector<16x128xi32>
    %23 = arith.shrui %21, %22 : vector<16x128xi32>
    %24 = arith.xori %21, %23 : vector<16x128xi32>
    %c9_i32 = arith.constant 9 : i32
    %25 = vector.broadcast %c9_i32 : i32 to vector<16x128xi32>
    %26 = arith.shrui %24, %25 : vector<16x128xi32>
    %c1048576000_i32 = arith.constant 1048576000 : i32
    %27 = vector.broadcast %c1048576000_i32 : i32 to vector<16x128xi32>
    %28 = arith.ori %26, %27 : vector<16x128xi32>
    %29 = tpu.bitcast %28 : vector<16x128xi32> -> vector<16x128xf32>
    %cst = arith.constant 3.750000e-01 : f32
    %30 = vector.broadcast %cst : f32 to vector<16x128xf32>
    %31 = arith.subf %29, %30 : vector<16x128xf32>
    %c0_2 = arith.constant 0 : index
    %c0_3 = arith.constant 0 : index
    %32 = vector.load %arg2[%c0_2, %c0_3] : memref<16x128xf32, #tpu.memory_space<vmem>>, vector<16x128xf32>
    %33 = arith.addf %32, %31 : vector<16x128xf32>
    %c0_4 = arith.constant 0 : index
    %c0_5 = arith.constant 0 : index
    %34 = vector.load %arg3[%c0_4, %c0_5] : memref<16x128xf32, #tpu.memory_space<vmem>>, vector<16x128xf32>
    tpu.vector_store %arg3[%c0_4, %c0_5], %33 {strides = array<i32>} : memref<16x128xf32, #tpu.memory_space<vmem>>, vector<16x128xf32>,
    return
  }
  func.func @transform_0(%arg0: i32, %arg1: memref<1xi32, #tpu.memory_space<smem>>) -> (i32, i32) {
    %c0_i32 = arith.constant 0 : i32
    %c0_i32_0 = arith.constant 0 : i32
    return %arg0, %c0_i32 : i32, i32
  }
  func.func @transform_1(%arg0: i32, %arg1: memref<1xi32, #tpu.memory_space<smem>>) -> (i32, i32) {
    %c0_i32 = arith.constant 0 : i32
    %c0_i32_0 = arith.constant 0 : i32
    return %arg0, %c0_i32 : i32, i32
  }
}

</mosaic_0001>

<llo_original>
// kernel: tpu_custom_call.1
$region0: #{tpu_custom_call.1}
  #allocation0 [shape = 'u32[]', space=smem, size = 0x4, offset = 0x4, fixed_abs, tag = 'smem constant byte address 0x4 - core index']
  #allocation1 [shape = 'u32[144,128]{1,0:T(1,128)}', space=vmem, size = 0x12000, scoped, tag = 'internal scratch']
  #allocation2 [shape = 's32[1]{0}', space=sflag, size = 0x4, scoped, tag = 'scoped memory for tpu_custom_call.1']
  #allocation3 [shape = 's32[1]{0:T(128)S(6)}', space=smem, size = 0x200, scoped, tag = 'prefetched SMEM operand 0']
  %s0 = inlined_call_operand.<no memory space> [shape: s32[1], index: 0, kind: input, shape index: {}]
  %s1 = inlined_call_operand.hbm [shape: f32[16,128], index: 1, kind: input, shape index: {}]
  %s2 = inlined_call_operand.hbm [shape: f32[16,128], index: 2, kind: output, shape index: {}]
  %s3 = sld [smem:[#allocation0]]
  $region18: #{tpu_custom_call.1} parent=0
    _
  %s5 = ssub.s32 1, %s3
  %s6 = scalar_select 0, %s5, %s3
  %7 = sst [smem:[#allocation3]] %s0
  $region1: #{tpu_custom_call.1} parent=0
    #allocation4 [shape = 'u8[8192]{0}', space=vmem, size = 0x2000, scoped, tag = 'input window, operand 1, single buffered']
    #allocation5 [shape = 's32[1]{0}', space=sflag, size = 0x4, scoped, tag = 'scoped memory for tpu_custom_call.1']
    #allocation6 [shape = 's32[1]{0}', space=sflag, size = 0x4, scoped, tag = 'scoped memory for tpu_custom_call.1']
    #allocation7 [shape = 'u8[8192]{0}', space=vmem, size = 0x2000, scoped, tag = 'output window, operand 0, single buffered']
    %8 = vsyncpa [#allocation5], 0
    %9 = vsyncpa [#allocation6], 0
    // Predicated region
    $region2: #{tpu_custom_call.1} parent=1 // pred_check
      _
    $region3: #{tpu_custom_call.1} parent=1 // pred_check_branch
      %11 = sbr.rel (0) target = $region5
    $region4: #{tpu_custom_call.1} parent=1 // pred_region
      %s13 = ssub.s32 256, 256
      %14 = vsyncadd [#allocation5], %s13
      %s15 = sshll.u32 [#allocation4], 4
      %s16 = int_to_ptr.vmem [resolvable:$true] %s15
      %21 = dma.hbm_to_vmem [thread:$0]  %s1, 256, %s16, [#allocation5], 128, 128, 8
    $region5: #{tpu_custom_call.1} parent=1 // pred_fallthru
      _
    // Predicated region
    $region6: #{tpu_custom_call.1} parent=1 // pred_check
      _
    $region7: #{tpu_custom_call.1} parent=1 // pred_check_branch
      %23 = sbr.rel (0) target = $region9
    $region8: #{tpu_custom_call.1} parent=1 // pred_region
      %24 = dma.done [#allocation5], 256
    $region9: #{tpu_custom_call.1} parent=1 // pred_fallthru
      _
    %v25 = vlaneseq
    %v26 = vshrl.u32 %v25, 7
    %v27 = vadd.s32 %v26, 8
    %v28 = vlaneseq
    %v29 = vand.u32 %v28, 127
    %s30 = smul.u32 0, 16
    %v31 = vstv %s30
    %v32 = vadd.s32 %v31, %v26
    %v33 = vadd.s32 %v31, %v27
    %v34 = vmul.u32 %v32, 128
    %v35 = vmul.u32 %v33, 128
    %v36 = vadd.s32 %v34, %v29
    %v37 = vadd.s32 %v35, %v29
    %s38 = sld [smem:[#allocation3]]
    %s39 = smul.u32 %s38, 2654435769
    %v40 = vstv %s39
    %v41 = vxor.u32 %v36, %v40
    %v42 = vxor.u32 %v37, %v40
    %v43 = vshrl.u32 %v41, 16
    %v44 = vshrl.u32 %v42, 16
    %v45 = vxor.u32 %v41, %v43
    %v46 = vxor.u32 %v42, %v44
    %v47 = vmul.u32 %v45, 2246822507
    %v48 = vmul.u32 %v46, 2246822507
    %v49 = vshrl.u32 %v47, 13
    %v50 = vshrl.u32 %v48, 13
    %v51 = vxor.u32 %v47, %v49
    %v52 = vxor.u32 %v48, %v50
    %v53 = vmul.u32 %v51, 3266489909
    %v54 = vmul.u32 %v52, 3266489909
    %v55 = vshrl.u32 %v53, 16
    %v56 = vshrl.u32 %v54, 16
    %v57 = vxor.u32 %v53, %v55
    %v58 = vxor.u32 %v54, %v56
    %v59 = vshrl.u32 %v57, 9
    %v60 = vshrl.u32 %v58, 9
    %v61 = vor.u32 %v59, 1048576000
    %v62 = vor.u32 %v60, 1048576000
    %v65 = vsub.f32 %v61, 0.375
    %v66 = vsub.f32 %v62, 0.375
    %v67 = vld [vmem:[#allocation4] sm:$0xff]
    %v68 = vld [vmem:[#allocation4 + $0x8] sm:$0xff]
    %v69 = vadd.f32 %v67, %v65
    %v70 = vadd.f32 %v68, %v66
    %71 = vst [vmem:[#allocation7] sm:$0xff] %v69
    %72 = vst [vmem:[#allocation7 + $0x8] sm:$0xff] %v70
    // Predicated region
    $region10: #{tpu_custom_call.1} parent=1 // pred_check
      _
    $region11: #{tpu_custom_call.1} parent=1 // pred_check_branch
      %74 = sbr.rel (0) target = $region13
    $region12: #{tpu_custom_call.1} parent=1 // pred_region
      %s76 = ssub.s32 256, 256
      %77 = vsyncadd [#allocation6], %s76
      %s78 = sshll.u32 [#allocation7], 4
      %s79 = int_to_ptr.vmem [resolvable:$true] %s78
      %84 = dma.vmem_to_hbm [thread:$0]  %s79, 256, %s2, [#allocation6], 128, 128, 8
    $region13: #{tpu_custom_call.1} parent=1 // pred_fallthru
      _
    // Predicated region
    $region14: #{tpu_custom_call.1} parent=1 // pred_check
      _
    $region15: #{tpu_custom_call.1} parent=1 // pred_check_branch
      %86 = sbr.rel (0) target = $region17
    $region16: #{tpu_custom_call.1} parent=1 // pred_region
      %87 = dma.done [#allocation6], 256
    $region17: #{tpu_custom_call.1} parent=1 // pred_fallthru
      _
    %88 = vsyncpa [#allocation5], 1
    %89 = vsyncpa [#allocation6], 1

</llo_original>
